<compile_context>
chip_gen: v5e
topology: v5e:2x2
jax: 0.10.0
libtpu: 0.0.40
codegen_flags: <defaults>
</compile_context>

<pallas_src>
import jax
import jax.numpy as jnp
from jax.experimental import pallas as pl
from jax.experimental.pallas import tpu as pltpu

GAMMA = -0.1
ZETA = 1.1


def _round_up(x, m):
    return ((x + m - 1) // m) * m


def _binary_approx_kernel(u_ref, k_ref, out_ref):
    u = u_ref[...].astype(jnp.float32)    # (tile_b, tile_n)
    k = k_ref[...].astype(jnp.float32)    # (1, tile_n), broadcasts over rows

    # sigmoid(log(u) - log(1-u) + c) == u / (u + (1-u) * exp(-c)),  k = exp(-c)
    den = u + (1.0 - u) * k
    s = u * pl.reciprocal(den)            # exact reciprocal

    mean_s = s * (ZETA - GAMMA) + GAMMA
    out_ref[...] = jnp.clip(mean_s, 0.0, 1.0).astype(out_ref.dtype)


def binary_approximator(u, alpha, beta, *, tile_b=512, tile_n=4096):
    """u: (B, N) in (0, 1); alpha, beta: (1, N). Returns z: (B, N)."""
    B, N = u.shape
    assert alpha.shape == (1, N) and beta.shape == (1, N)

    # Per-feature constant hoisted out of the kernel (tiny O(N) pre-pass):
    #   c = log(softplus(alpha)) / softplus(beta);  k = exp(-c)
    sp_alpha = jax.nn.softplus(alpha.astype(jnp.float32))
    sp_beta = jax.nn.softplus(beta.astype(jnp.float32))
    k = jnp.exp(-jnp.log(sp_alpha) / sp_beta)          # (1, N)

    # Clamp tiles to the (8, 128)-rounded array extents (avoids huge blocks for
    # tiny arrays); no array padding -- ragged edge blocks are masked by Pallas.
    tile_b_eff = min(tile_b, _round_up(B, 8))
    tile_n_eff = min(tile_n, _round_up(N, 128))

    # Megacore guard (v7x: 2 TensorCores): if everything fits in one tile,
    # split so at least one "parallel" grid axis has >= 2 steps.
    if pl.cdiv(B, tile_b_eff) * pl.cdiv(N, tile_n_eff) == 1:
        if B > 8:
            tile_b_eff = max(8, _round_up(pl.cdiv(B, 2), 8))
        elif N > 128:
            tile_n_eff = max(128, _round_up(pl.cdiv(N, 2), 128))

    # Feature tiles outer, batch tiles innermost -> k block index is constant
    # across the inner axis (no redundant param DMA).
    grid = (pl.cdiv(N, tile_n_eff), pl.cdiv(B, tile_b_eff))

    out = pl.pallas_call(
        _binary_approx_kernel,
        out_shape=jax.ShapeDtypeStruct((B, N), u.dtype),
        grid_spec=pltpu.PrefetchScalarGridSpec(
            num_scalar_prefetch=0,
            grid=grid,
            in_specs=[
                pl.BlockSpec((tile_b_eff, tile_n_eff), lambda j, i: (i, j)),  # u
                pl.BlockSpec((1, tile_n_eff), lambda j, i: (0, j)),           # k
            ],
            out_specs=pl.BlockSpec((tile_b_eff, tile_n_eff), lambda j, i: (i, j)),
        ),
        compiler_params=pltpu.CompilerParams(
            dimension_semantics=("parallel", "parallel"),
            # 48 MiB: fits double-buffered 8 MiB u/out tiles, above v5e's 16 MiB
            # scoped default, and safely under v7x's 64 MiB physical VMEM.
            vmem_limit_bytes=48 * 1024 * 1024,
        ),
    )(u, k)
    return out


def _reference(u, alpha, beta):
    s = jax.nn.sigmoid(
        jnp.log(u) - jnp.log(1.0 - u)
        + jnp.log(jax.nn.softplus(alpha)) / jax.nn.softplus(beta)
    )
    mean_s = s * (ZETA - GAMMA) + GAMMA
    return jnp.clip(mean_s, 0.0, 1.0)


if __name__ == "__main__":
    key = jax.random.PRNGKey(0)
    k_u, k_a, k_b = jax.random.split(key, 3)

    batch, input_size = 8, 128

    # u must lie strictly inside (0, 1) (matches the PyTorch usage).
    u = jax.random.uniform(
        k_u, (batch, input_size), dtype=jnp.float32, minval=1e-3, maxval=1.0 - 1e-3
    )
    # deterministic "parameters", matching torch.randn / torch.rand shapes
    alpha = jax.random.normal(k_a, (1, input_size), dtype=jnp.float32)
    beta = jax.random.uniform(k_b, (1, input_size), dtype=jnp.float32)

    z = binary_approximator(u, alpha, beta)
    z = jax.block_until_ready(z)

    z_ref = _reference(u, alpha, beta)
    assert z.shape == (batch, input_size)
    assert jnp.allclose(z, z_ref, atol=1e-5, rtol=1e-5), "mismatch vs reference"

    # Ragged (non-tile-aligned) shape: exercises the cdiv grid / masked edges.
    B2, N2 = 1000, 300
    u2 = jax.random.uniform(k_u, (B2, N2), jnp.float32, minval=1e-3, maxval=1 - 1e-3)
    a2 = jax.random.normal(k_a, (1, N2), jnp.float32)
    b2 = jax.random.uniform(k_b, (1, N2), jnp.float32)
    z2 = jax.block_until_ready(binary_approximator(u2, a2, b2))
    assert z2.shape == (B2, N2)
    assert jnp.allclose(z2, _reference(u2, a2, b2), atol=1e-5, rtol=1e-5)

    # Shape that triggers the megacore single-tile split guard.
    B3, N3 = 16, 128
    u3 = jax.random.uniform(k_u, (B3, N3), jnp.float32, minval=1e-3, maxval=1 - 1e-3)
    a3 = jax.random.normal(k_a, (1, N3), jnp.float32)
    b3 = jax.random.uniform(k_b, (1, N3), jnp.float32)
    z3 = jax.block_until_ready(binary_approximator(u3, a3, b3))
    assert jnp.allclose(z3, _reference(u3, a3, b3), atol=1e-5, rtol=1e-5)

    print("KERNEL_OK")
</pallas_src>

<mosaic_0001>
module attributes {stable_mosaic.version = 11 : i64} {
  func.func @_binary_approx_kernel(%arg0: i32, %arg1: i32, %arg2: memref<8x128xf32, #tpu.memory_space<vmem>>, %arg3: memref<1x128xf32, #tpu.memory_space<vmem>>, %arg4: memref<8x128xf32, #tpu.memory_space<vmem>>) attributes {dimension_semantics = [#tpu.dimension_semantics<parallel>, #tpu.dimension_semantics<parallel>], iteration_bounds = array<i64: 1, 1>, scalar_prefetch = 0 : i64, scratch_operands = 0 : i64, tpu.core_type = #tpu.core_type<tc>, window_params = [{transform_indices = @transform_0, window_bounds = array<i64: 8, 128>}, {transform_indices = @transform_1, window_bounds = array<i64: 1, 128>}, {transform_indices = @transform_2, window_bounds = array<i64: 8, 128>}]} {
    %c0 = arith.constant 0 : index
    %c0_0 = arith.constant 0 : index
    %0 = vector.load %arg2[%c0, %c0_0] : memref<8x128xf32, #tpu.memory_space<vmem>>, vector<8x128xf32>
    %c0_1 = arith.constant 0 : index
    %c0_2 = arith.constant 0 : index
    %1 = vector.load %arg3[%c0_1, %c0_2] : memref<1x128xf32, #tpu.memory_space<vmem>>, vector<1x128xf32>
    %cst = arith.constant 1.000000e+00 : f32
    %2 = vector.broadcast %cst : f32 to vector<8x128xf32>
    %3 = arith.subf %2, %0 : vector<8x128xf32>
    %4 = vector.broadcast %1 : vector<1x128xf32> to vector<8x128xf32>
    %5 = arith.mulf %3, %4 : vector<8x128xf32>
    %6 = arith.addf %0, %5 : vector<8x128xf32>
    %7 = tpu.reciprocal %6 : vector<8x128xf32> -> vector<8x128xf32>
    %8 = arith.mulf %0, %7 : vector<8x128xf32>
    %cst_3 = arith.constant 1.200000e+00 : f32
    %9 = vector.broadcast %cst_3 : f32 to vector<8x128xf32>
    %10 = arith.mulf %8, %9 : vector<8x128xf32>
    %cst_4 = arith.constant -1.000000e-01 : f32
    %11 = vector.broadcast %cst_4 : f32 to vector<8x128xf32>
    %12 = arith.addf %10, %11 : vector<8x128xf32>
    %cst_5 = arith.constant 0.000000e+00 : f32
    %cst_6 = arith.constant 1.000000e+00 : f32
    %13 = vector.broadcast %cst_5 : f32 to vector<8x128xf32>
    %14 = arith.maximumf %13, %12 : vector<8x128xf32>
    %15 = vector.broadcast %cst_6 : f32 to vector<8x128xf32>
    %16 = arith.minimumf %15, %14 : vector<8x128xf32>
    %c0_7 = arith.constant 0 : index
    %c0_8 = arith.constant 0 : index
    %17 = vector.load %arg4[%c0_7, %c0_8] : memref<8x128xf32, #tpu.memory_space<vmem>>, vector<8x128xf32>
    tpu.vector_store %arg4[%c0_7, %c0_8], %16 {strides = array<i32>} : memref<8x128xf32, #tpu.memory_space<vmem>>, vector<8x128xf32>,
    return
  }
  func.func @transform_0(%arg0: i32, %arg1: i32) -> (i32, i32) {
    %c0_i32 = arith.constant 0 : i32
    return %arg1, %arg0 : i32, i32
  }
  func.func @transform_1(%arg0: i32, %arg1: i32) -> (i32, i32) {
    %c0_i32 = arith.constant 0 : i32
    %c0_i32_0 = arith.constant 0 : i32
    return %c0_i32, %arg0 : i32, i32
  }
  func.func @transform_2(%arg0: i32, %arg1: i32) -> (i32, i32) {
    %c0_i32 = arith.constant 0 : i32
    return %arg1, %arg0 : i32, i32
  }
}

</mosaic_0001>

<llo_original>
// kernel: tpu_custom_call.1
$region0: #{tpu_custom_call.1}
  #allocation0 [shape = 'u32[]', space=smem, size = 0x4, offset = 0x4, fixed_abs, tag = 'smem constant byte address 0x4 - core index']
  #allocation1 [shape = 'u32[72,128]{1,0:T(1,128)}', space=vmem, size = 0x9000, scoped, tag = 'internal scratch']
  %s0 = inlined_call_operand.hbm [shape: f32[8,128], index: 0, kind: input, shape index: {}]
  %s1 = inlined_call_operand.hbm [shape: f32[1,128], index: 1, kind: input, shape index: {}]
  %s2 = inlined_call_operand.hbm [shape: f32[8,128], index: 2, kind: output, shape index: {}]
  %s3 = sld [smem:[#allocation0]]
  $region26: #{tpu_custom_call.1} parent=0
    _
  %s5 = ssub.s32 1, %s3
  %s6 = scalar_select 0, %s5, %s3
  $region1: #{tpu_custom_call.1} parent=0
    #allocation2 [shape = 'u8[4096]{0}', space=vmem, size = 0x1000, scoped, tag = 'input window, operand 0, single buffered']
    #allocation3 [shape = 's32[1]{0}', space=sflag, size = 0x4, scoped, tag = 'scoped memory for tpu_custom_call.1']
    #allocation4 [shape = 's32[1]{0}', space=sflag, size = 0x4, scoped, tag = 'scoped memory for tpu_custom_call.1']
    #allocation5 [shape = 'u8[512]{0}', space=vmem, size = 0x400, scoped, tag = 'input window, operand 1, single buffered']
    #allocation6 [shape = 's32[1]{0}', space=sflag, size = 0x4, scoped, tag = 'scoped memory for tpu_custom_call.1']
    #allocation7 [shape = 'u8[4096]{0}', space=vmem, size = 0x1000, scoped, tag = 'output window, operand 0, single buffered']
    %7 = vsyncpa [#allocation3], 0
    %8 = vsyncpa [#allocation6], 0
    %9 = vsyncpa [#allocation4], 0
    // Predicated region
    $region2: #{tpu_custom_call.1} parent=1 // pred_check
      _
    $region3: #{tpu_custom_call.1} parent=1 // pred_check_branch
      %11 = sbr.rel (0) target = $region5
    $region4: #{tpu_custom_call.1} parent=1 // pred_region
      %13 = vsyncadd [#allocation3], 0
      %s15 = sshll.u32 %s0, 4
      %s16 = int_to_ptr.hbm [resolvable:$true] %s15
      %s17 = sshll.u32 [#allocation2], 4
      %s18 = int_to_ptr.vmem [resolvable:$true] %s17
      %20 = dma.hbm_to_vmem [thread:$0]  %s16, 128, %s18, [#allocation3]
    $region5: #{tpu_custom_call.1} parent=1 // pred_fallthru
      _
    // Predicated region
    $region6: #{tpu_custom_call.1} parent=1 // pred_check
      _
    $region7: #{tpu_custom_call.1} parent=1 // pred_check_branch
      %22 = sbr.rel (0) target = $region9
    $region8: #{tpu_custom_call.1} parent=1 // pred_region
      %24 = vsyncadd [#allocation6], 0
      %s26 = sshll.u32 %s1, 4
      %s27 = int_to_ptr.hbm [resolvable:$true] %s26
      %s28 = sshll.u32 [#allocation5], 4
      %s29 = int_to_ptr.vmem [resolvable:$true] %s28
      %31 = dma.hbm_to_vmem [thread:$0]  %s27, 16, %s29, [#allocation6]
    $region9: #{tpu_custom_call.1} parent=1 // pred_fallthru
      _
    // Predicated region
    $region10: #{tpu_custom_call.1} parent=1 // pred_check
      _
    $region11: #{tpu_custom_call.1} parent=1 // pred_check_branch
      %33 = sbr.rel (0) target = $region13
    $region12: #{tpu_custom_call.1} parent=1 // pred_region
      %35 = dma.done [#allocation3], 128
    $region13: #{tpu_custom_call.1} parent=1 // pred_fallthru
      _
    // Predicated region
    $region14: #{tpu_custom_call.1} parent=1 // pred_check
      _
    $region15: #{tpu_custom_call.1} parent=1 // pred_check_branch
      %37 = sbr.rel (0) target = $region17
    $region16: #{tpu_custom_call.1} parent=1 // pred_region
      %39 = dma.done [#allocation6], 16
    $region17: #{tpu_custom_call.1} parent=1 // pred_fallthru
      _
    %v40 = vld [vmem:[#allocation2] sm:$0xff]
    %v41 = vld [vmem:[#allocation5] sm:$0x1]
    %v42 = vsub.f32 1.0, %v40
    %v44 = vperm.slane %v41, 0
    %v46 = vmul.f32 %v42, %v44
    %v47 = vadd.f32 %v40, %v46
    %v48 = vrcp.pop %v47
    %v49 = vmul.f32 %v47, %v48
    %v50 = vsub.f32 1.0, %v49
    %v51 = vmul.f32 %v48, %v50
    %v52 = vadd.f32 %v48, %v51
    %vm53 = vweird.f32 %v47
    %vm54 = vweird.f32 %v48
    %vm55 = vmor %vm53, %vm54
    %v56 = vsel %vm55, %v48, %v52
    %v57 = vand.u32 2147483647, %v47
    %vm58 = vcmp.eq.f32.partialorder %v57, 8.507059e+37
    %v59 = vand.u32 %v47, 2147483648
    %v60 = vor.u32 1.1754944e-38, %v59
    %v61 = vsel %vm58, %v60, %v56
    %v62 = vmul.f32 %v40, %v61
    %v63 = vmul.f32 %v62, 1.2
    %v64 = vadd.f32 %v63, -0.1
    %v65 = vmax.f32 %v64, 0.0
    %v66 = vmin.f32 %v65, 1.0
    %67 = vst [vmem:[#allocation7] sm:$0xff] %v66
    // Predicated region
    $region18: #{tpu_custom_call.1} parent=1 // pred_check
      _
    $region19: #{tpu_custom_call.1} parent=1 // pred_check_branch
      %69 = sbr.rel (0) target = $region21
    $region20: #{tpu_custom_call.1} parent=1 // pred_region
      %71 = vsyncadd [#allocation4], 0
      %s73 = sshll.u32 [#allocation7], 4
      %s74 = int_to_ptr.vmem [resolvable:$true] %s73
      %s75 = sshll.u32 %s2, 4
      %s76 = int_to_ptr.hbm [resolvable:$true] %s75
      %78 = dma.vmem_to_hbm [thread:$0]  %s74, 128, %s76, [#allocation4]
    $region21: #{tpu_custom_call.1} parent=1 // pred_fallthru
      _
    // Predicated region
    $region22: #{tpu_custom_call.1} parent=1 // pred_check
      _
    $region23: #{tpu_custom_call.1} parent=1 // pred_check_branch
      %80 = sbr.rel (0) target = $region25
    $region24: #{tpu_custom_call.1} parent=1 // pred_region
      %82 = dma.done [#allocation4], 128
    $region25: #{tpu_custom_call.1} parent=1 // pred_fallthru
      _
    %83 = vsyncpa [#allocation3], 1
    %84 = vsyncpa [#allocation6], 1
    %85 = vsyncpa [#allocation4], 1

</llo_original>
